<compile_context>
chip_gen: v7x
topology: tpu7x:2x2x1
jax: 0.10.0
libtpu: 0.0.40
codegen_flags: <defaults>
</compile_context>

<pallas_src>
import jax
import jax.numpy as jnp
from jax.experimental import pallas as pl
from jax.experimental.pallas import tpu as pltpu

_EPS = 1e-4          # the 0.0001 in the PyTorch module
_SUBLANES = 8


def _update_kernel(cold_ref, fold_ref, c_ref, f_ref,
                   newc_ref, newf_ref, base_ref, psum_ref):
    """Pass 1 (per tile): fused confidence/feature update + partial sum of cdsq."""
    cold = cold_ref[...].astype(jnp.float32)
    fold = fold_ref[...].astype(jnp.float32)
    c = c_ref[...].astype(jnp.float32)
    f = f_ref[...].astype(jnp.float32)

    newc = cold + c
    newc_ref[...] = newc.astype(newc_ref.dtype)

    # newf = (fold*cold + f*c) / (cold + c + eps)
    # approx reciprocal runs on the EUP (otherwise-idle slot); one Newton step
    # restores ~f32 accuracy so forward numerics match the PyTorch divide.
    denom = newc + _EPS
    inv = pl.reciprocal(denom, approx=True)
    inv = inv * (2.0 - denom * inv)
    newf_ref[...] = ((fold * cold + f * c) * inv).astype(newf_ref.dtype)

    # Elementwise loss terms + per-tile partial sum of cdsq for the global mean.
    d = fold - f
    cdsq = c * d * d
    base_ref[...] = (cdsq + cold * cdsq).astype(base_ref.dtype)
    # Broadcast the per-tile scalar into an (8,128)-aligned VMEM block so the
    # grid axis stays "parallel"; zero-padded tiles contribute exactly 0 (c==0).
    psum_ref[...] = jnp.full((_SUBLANES, 128), jnp.sum(cdsq), dtype=jnp.float32)


def _loss_kernel(mean_ref, base_ref, cold_ref, loss_ref):
    """Pass 2 (per tile): loss = base - cold * mean; mean is a scalar in SMEM."""
    mean = mean_ref[0, 0]
    loss_ref[...] = (base_ref[...].astype(jnp.float32)
                     - cold_ref[...].astype(jnp.float32) * mean
                     ).astype(loss_ref.dtype)


def _layout(total, max_tile_bytes):
    """Pick a lane-dense (rows, width) slab and a row-tile that fits the VMEM budget."""
    width = 128
    for w in (2048, 1024, 512, 256):          # widest lane-dense last dim that fits
        if total >= _SUBLANES * w:
            width = w
            break
    rows = -(-total // width)                 # ceil
    rows = -(-rows // _SUBLANES) * _SUBLANES  # round up to a sublane multiple
    max_tile_rows = max(_SUBLANES,
                        (max_tile_bytes // (width * 4)) // _SUBLANES * _SUBLANES)
    tile_rows = min(max_tile_rows, rows)
    n_tiles = -(-rows // tile_rows)
    padded_rows = n_tiles * tile_rows
    return width, tile_rows, n_tiles, padded_rows


def union_forward(cfold, cf, *, max_tile_bytes=1 << 20):
    """Pallas implementation of union.forward. Returns ((newc, newf), loss)."""
    cold, fold = cfold
    c, f = cf
    if cold is None:
        return (cf, 0.0)

    orig_shape = c.shape
    out_dtype = jnp.result_type(cold.dtype, fold.dtype, c.dtype, f.dtype)
    total = int(c.size)

    width, tile_rows, n_tiles, padded_rows = _layout(total, max_tile_bytes)
    padded_total = padded_rows * width

    def as_slab(x):
        x = jnp.ravel(jnp.asarray(x, out_dtype))
        if padded_total != total:
            x = jnp.pad(x, (0, padded_total - total))   # zero pad -> pad cdsq == 0
        return x.reshape(padded_rows, width)

    cold2, fold2, c2, f2 = (as_slab(t) for t in (cold, fold, c, f))

    tile_spec = pl.BlockSpec((tile_rows, width), lambda i: (i, 0))
    psum_spec = pl.BlockSpec((_SUBLANES, 128), lambda i: (i, 0))
    slab_sds = jax.ShapeDtypeStruct((padded_rows, width), out_dtype)
    psum_sds = jax.ShapeDtypeStruct((n_tiles * _SUBLANES, 128), jnp.float32)
    cparams = pltpu.CompilerParams(dimension_semantics=("parallel",),
                                   vmem_limit_bytes=32 * 1024 * 1024)

    # Pass 1: pipelined, megacore-parallel elementwise update + partial sums.
    newc2, newf2, base2, partials = pl.pallas_call(
        _update_kernel,
        grid=(n_tiles,),
        in_specs=[tile_spec] * 4,
        out_specs=(tile_spec, tile_spec, tile_spec, psum_spec),
        out_shape=(slab_sds, slab_sds, slab_sds, psum_sds),
        compiler_params=cparams,
    )(cold2, fold2, c2, f2)

    # Global mean over the *valid* element count (padding contributes 0).
    per_tile = partials.reshape(n_tiles, _SUBLANES, 128)[:, 0, 0]
    mean = (jnp.sum(per_tile) / jnp.float32(total)).reshape(1, 1).astype(jnp.float32)

    # Pass 2: loss = base - cold * mean, scalar mean passed via SMEM.
    loss2 = pl.pallas_call(
        _loss_kernel,
        grid=(n_tiles,),
        in_specs=[pl.BlockSpec(memory_space=pltpu.MemorySpace.SMEM),
                  tile_spec, tile_spec],
        out_specs=tile_spec,
        out_shape=slab_sds,
        compiler_params=cparams,
    )(mean, base2, cold2)

    def back(x2):
        return x2.reshape(-1)[:total].reshape(orig_shape)

    return (back(newc2), back(newf2)), back(loss2)


if __name__ == "__main__":
    def ref_union(cold, fold, c, f):
        cold, fold, c, f = (jnp.asarray(t, jnp.float32) for t in (cold, fold, c, f))
        d = fold - f
        cdsq = c * d * d
        newc = cold + c
        newf = (fold * cold + f * c) / (cold + c + _EPS)
        loss = cdsq + cold * cdsq - cold * jnp.mean(cdsq)
        return newc, newf, loss

    def check(name, got, want, atol, rtol):
        ok = jnp.allclose(jnp.asarray(got, jnp.float32), want, atol=atol, rtol=rtol)
        assert bool(ok), f"{name} mismatch"

    keys = jax.random.split(jax.random.PRNGKey(0), 8)

    # Case 1: small NCHW-style f32 tensors (single tile, no padding).
    shape = (2, 4, 16, 16)
    cold = jax.nn.softplus(jax.random.normal(keys[0], shape, jnp.float32))
    fold = jax.random.normal(keys[1], shape, jnp.float32)
    c = jax.nn.softplus(jax.random.normal(keys[2], shape, jnp.float32))
    f = jax.random.normal(keys[3], shape, jnp.float32)
    (newc, newf), loss = union_forward((cold, fold), (c, f))
    jax.block_until_ready((newc, newf, loss))
    rc, rf, rl = ref_union(cold, fold, c, f)
    check("newc", newc, rc, 1e-4, 1e-4)
    check("newf", newf, rf, 1e-4, 1e-4)
    check("loss", loss, rl, 1e-4, 1e-4)

    # Case 2: non-128-multiple size -> zero padding + a multi-tile grid
    # (tiny max_tile_bytes just to exercise the grid at test scale).
    shape2 = (2, 8, 33, 37)
    cold2 = jax.nn.softplus(jax.random.normal(keys[4], shape2, jnp.float32))
    fold2 = jax.random.normal(keys[5], shape2, jnp.float32)
    c2 = jax.nn.softplus(jax.random.normal(keys[6], shape2, jnp.float32))
    f2 = jax.random.normal(keys[7], shape2, jnp.float32)
    (newc2, newf2), loss2 = union_forward((cold2, fold2), (c2, f2),
                                          max_tile_bytes=64 * 1024)
    jax.block_until_ready((newc2, newf2, loss2))
    rc2, rf2, rl2 = ref_union(cold2, fold2, c2, f2)
    check("newc_pad", newc2, rc2, 1e-4, 1e-4)
    check("newf_pad", newf2, rf2, 1e-4, 1e-4)
    check("loss_pad", loss2, rl2, 1e-4, 1e-4)

    # Case 3: bf16 I/O (halved HBM traffic); math stays f32 inside the kernel.
    cold_b, fold_b, c_b, f_b = (t.astype(jnp.bfloat16)
                                for t in (cold2, fold2, c2, f2))
    (newc_b, newf_b), loss_b = union_forward((cold_b, fold_b), (c_b, f_b))
    jax.block_until_ready((newc_b, newf_b, loss_b))
    rcb, rfb, rlb = ref_union(cold_b, fold_b, c_b, f_b)
    check("newc_bf16", newc_b, rcb, 5e-2, 2e-2)
    check("newf_bf16", newf_b, rfb, 5e-2, 2e-2)
    check("loss_bf16", loss_b, rlb, 5e-1, 2e-2)

    print("KERNEL_OK")
</pallas_src>

<mosaic_0001>
module attributes {stable_mosaic.version = 11 : i64} {
  func.func @_update_kernel(%arg0: i32, %arg1: memref<8x256xf32, #tpu.memory_space<vmem>>, %arg2: memref<8x256xf32, #tpu.memory_space<vmem>>, %arg3: memref<8x256xf32, #tpu.memory_space<vmem>>, %arg4: memref<8x256xf32, #tpu.memory_space<vmem>>, %arg5: memref<8x256xf32, #tpu.memory_space<vmem>>, %arg6: memref<8x256xf32, #tpu.memory_space<vmem>>, %arg7: memref<8x256xf32, #tpu.memory_space<vmem>>, %arg8: memref<8x128xf32, #tpu.memory_space<vmem>>) attributes {dimension_semantics = [#tpu.dimension_semantics<parallel>], iteration_bounds = array<i64: 1>, scalar_prefetch = 0 : i64, scratch_operands = 0 : i64, tpu.core_type = #tpu.core_type<tc>, window_params = [{transform_indices = @transform_0, window_bounds = array<i64: 8, 256>}, {transform_indices = @transform_1, window_bounds = array<i64: 8, 256>}, {transform_indices = @transform_2, window_bounds = array<i64: 8, 256>}, {transform_indices = @transform_3, window_bounds = array<i64: 8, 256>}, {transform_indices = @transform_4, window_bounds = array<i64: 8, 256>}, {transform_indices = @transform_5, window_bounds = array<i64: 8, 256>}, {transform_indices = @transform_6, window_bounds = array<i64: 8, 256>}, {transform_indices = @transform_7, window_bounds = array<i64: 8, 128>}]} {
    %c0 = arith.constant 0 : index
    %c0_0 = arith.constant 0 : index
    %0 = vector.load %arg1[%c0, %c0_0] : memref<8x256xf32, #tpu.memory_space<vmem>>, vector<8x256xf32>
    %c0_1 = arith.constant 0 : index
    %c0_2 = arith.constant 0 : index
    %1 = vector.load %arg2[%c0_1, %c0_2] : memref<8x256xf32, #tpu.memory_space<vmem>>, vector<8x256xf32>
    %c0_3 = arith.constant 0 : index
    %c0_4 = arith.constant 0 : index
    %2 = vector.load %arg3[%c0_3, %c0_4] : memref<8x256xf32, #tpu.memory_space<vmem>>, vector<8x256xf32>
    %c0_5 = arith.constant 0 : index
    %c0_6 = arith.constant 0 : index
    %3 = vector.load %arg4[%c0_5, %c0_6] : memref<8x256xf32, #tpu.memory_space<vmem>>, vector<8x256xf32>
    %4 = arith.addf %0, %2 : vector<8x256xf32>
    %c0_7 = arith.constant 0 : index
    %c0_8 = arith.constant 0 : index
    %5 = vector.load %arg5[%c0_7, %c0_8] : memref<8x256xf32, #tpu.memory_space<vmem>>, vector<8x256xf32>
    tpu.vector_store %arg5[%c0_7, %c0_8], %4 {strides = array<i32>} : memref<8x256xf32, #tpu.memory_space<vmem>>, vector<8x256xf32>,
    %cst = arith.constant 9.99999974E-5 : f32
    %6 = vector.broadcast %cst : f32 to vector<8x256xf32>
    %7 = arith.addf %4, %6 : vector<8x256xf32>
    %8 = tpu.reciprocal %7 {approx = true} : vector<8x256xf32> -> vector<8x256xf32>
    %9 = arith.mulf %7, %8 : vector<8x256xf32>
    %cst_9 = arith.constant 2.000000e+00 : f32
    %10 = vector.broadcast %cst_9 : f32 to vector<8x256xf32>
    %11 = arith.subf %10, %9 : vector<8x256xf32>
    %12 = arith.mulf %8, %11 : vector<8x256xf32>
    %13 = arith.mulf %1, %0 : vector<8x256xf32>
    %14 = arith.mulf %3, %2 : vector<8x256xf32>
    %15 = arith.addf %13, %14 : vector<8x256xf32>
    %16 = arith.mulf %15, %12 : vector<8x256xf32>
    %c0_10 = arith.constant 0 : index
    %c0_11 = arith.constant 0 : index
    %17 = vector.load %arg6[%c0_10, %c0_11] : memref<8x256xf32, #tpu.memory_space<vmem>>, vector<8x256xf32>
    tpu.vector_store %arg6[%c0_10, %c0_11], %16 {strides = array<i32>} : memref<8x256xf32, #tpu.memory_space<vmem>>, vector<8x256xf32>,
    %18 = arith.subf %1, %3 : vector<8x256xf32>
    %19 = arith.mulf %2, %18 : vector<8x256xf32>
    %20 = arith.mulf %19, %18 : vector<8x256xf32>
    %21 = arith.mulf %0, %20 : vector<8x256xf32>
    %22 = arith.addf %20, %21 : vector<8x256xf32>
    %c0_12 = arith.constant 0 : index
    %c0_13 = arith.constant 0 : index
    %23 = vector.load %arg7[%c0_12, %c0_13] : memref<8x256xf32, #tpu.memory_space<vmem>>, vector<8x256xf32>
    tpu.vector_store %arg7[%c0_12, %c0_13], %22 {strides = array<i32>} : memref<8x256xf32, #tpu.memory_space<vmem>>, vector<8x256xf32>,
    %24 = vector.shape_cast %20 : vector<8x256xf32> to vector<1x8x256xf32>
    %cst_14 = arith.constant dense<0.000000e+00> : vector<1xf32>
    %25 = vector.multi_reduction <add>, %24, %cst_14 [1, 2] : vector<1x8x256xf32> to vector<1xf32>
    %26 = vector.shape_cast %25 : vector<1xf32> to vector<1x1x1xf32>
    %27 = vector.extract %26[0, 0, 0] : f32 from vector<1x1x1xf32>
    %28 = vector.broadcast %27 : f32 to vector<8x128xf32>
    %c0_15 = arith.constant 0 : index
    %c0_16 = arith.constant 0 : index
    %29 = vector.load %arg8[%c0_15, %c0_16] : memref<8x128xf32, #tpu.memory_space<vmem>>, vector<8x128xf32>
    tpu.vector_store %arg8[%c0_15, %c0_16], %28 {strides = array<i32>} : memref<8x128xf32, #tpu.memory_space<vmem>>, vector<8x128xf32>,
    return
  }
  func.func @transform_0(%arg0: i32) -> (i32, i32) {
    %c0_i32 = arith.constant 0 : i32
    %c0_i32_0 = arith.constant 0 : i32
    return %arg0, %c0_i32 : i32, i32
  }
  func.func @transform_1(%arg0: i32) -> (i32, i32) {
    %c0_i32 = arith.constant 0 : i32
    %c0_i32_0 = arith.constant 0 : i32
    return %arg0, %c0_i32 : i32, i32
  }
  func.func @transform_2(%arg0: i32) -> (i32, i32) {
    %c0_i32 = arith.constant 0 : i32
    %c0_i32_0 = arith.constant 0 : i32
    return %arg0, %c0_i32 : i32, i32
  }
  func.func @transform_3(%arg0: i32) -> (i32, i32) {
    %c0_i32 = arith.constant 0 : i32
    %c0_i32_0 = arith.constant 0 : i32
    return %arg0, %c0_i32 : i32, i32
  }
  func.func @transform_4(%arg0: i32) -> (i32, i32) {
    %c0_i32 = arith.constant 0 : i32
    %c0_i32_0 = arith.constant 0 : i32
    return %arg0, %c0_i32 : i32, i32
  }
  func.func @transform_5(%arg0: i32) -> (i32, i32) {
    %c0_i32 = arith.constant 0 : i32
    %c0_i32_0 = arith.constant 0 : i32
    return %arg0, %c0_i32 : i32, i32
  }
  func.func @transform_6(%arg0: i32) -> (i32, i32) {
    %c0_i32 = arith.constant 0 : i32
    %c0_i32_0 = arith.constant 0 : i32
    return %arg0, %c0_i32 : i32, i32
  }
  func.func @transform_7(%arg0: i32) -> (i32, i32) {
    %c0_i32 = arith.constant 0 : i32
    %c0_i32_0 = arith.constant 0 : i32
    return %arg0, %c0_i32 : i32, i32
  }
}

</mosaic_0001>

<llo_original>
// kernel: tpu_custom_call.1
$region0: #{tpu_custom_call.1}
  #allocation0 [shape = 'u32[]', space=smem, size = 0x4, offset = 0x4, fixed_abs, tag = 'smem constant byte address 0x4 - core index']
  #allocation1 [shape = 'u32[144,128]{1,0:T(1,128)}', space=vmem, size = 0x12000, scoped, tag = 'internal scratch']
  %s0 = inlined_call_operand.hbm [shape: f32[8,256], index: 0, kind: input, shape index: {}]
  %s1 = inlined_call_operand.hbm [shape: f32[8,256], index: 1, kind: input, shape index: {}]
  %s2 = inlined_call_operand.hbm [shape: f32[8,256], index: 2, kind: input, shape index: {}]
  %s3 = inlined_call_operand.hbm [shape: f32[8,256], index: 3, kind: input, shape index: {}]
  %s4 = inlined_call_operand.hbm [shape: f32[8,256], index: 4, kind: output, shape index: {0}]
  %s5 = inlined_call_operand.hbm [shape: f32[8,256], index: 5, kind: output, shape index: {1}]
  %s6 = inlined_call_operand.hbm [shape: f32[8,256], index: 6, kind: output, shape index: {2}]
  %s7 = inlined_call_operand.hbm [shape: f32[8,128], index: 7, kind: output, shape index: {3}]
  %8 = xla_tuple %s4, %s5, %s6, %s7
  %s9 = sld [smem:[#allocation0]]
  $region66: #{tpu_custom_call.1} parent=0
    _
  %s11 = ssub.s32 1, %s9
  %s12 = scalar_select 0, %s11, %s9
  $region1: #{tpu_custom_call.1} parent=0
    #allocation2 [shape = 'u8[8192]{0}', space=vmem, size = 0x2000, scoped, tag = 'input window, operand 0, single buffered']
    #allocation3 [shape = 's32[1]{0}', space=sflag, size = 0x4, scoped, tag = 'scoped memory for tpu_custom_call.1']
    #allocation4 [shape = 's32[1]{0}', space=sflag, size = 0x4, scoped, tag = 'scoped memory for tpu_custom_call.1']
    #allocation5 [shape = 'u8[8192]{0}', space=vmem, size = 0x2000, scoped, tag = 'input window, operand 1, single buffered']
    #allocation6 [shape = 's32[1]{0}', space=sflag, size = 0x4, scoped, tag = 'scoped memory for tpu_custom_call.1']
    #allocation7 [shape = 'u8[8192]{0}', space=vmem, size = 0x2000, scoped, tag = 'input window, operand 2, single buffered']
    #allocation8 [shape = 'u8[8192]{0}', space=vmem, size = 0x2000, scoped, tag = 'input window, operand 3, single buffered']
    #allocation9 [shape = 's32[1]{0}', space=sflag, size = 0x4, scoped, tag = 'scoped memory for tpu_custom_call.1']
    #allocation10 [shape = 'u8[8192]{0}', space=vmem, size = 0x2000, scoped, tag = 'output window, operand 0, single buffered']
    #allocation11 [shape = 'u8[8192]{0}', space=vmem, size = 0x2000, scoped, tag = 'output window, operand 1, single buffered']
    #allocation12 [shape = 's32[1]{0}', space=sflag, size = 0x4, scoped, tag = 'scoped memory for tpu_custom_call.1']
    #allocation13 [shape = 'u8[8192]{0}', space=vmem, size = 0x2000, scoped, tag = 'output window, operand 2, single buffered']
    #allocation14 [shape = 'u8[4096]{0}', space=vmem, size = 0x1000, scoped, tag = 'output window, operand 3, single buffered']
    #allocation15 [shape = 's32[1]{0}', space=sflag, size = 0x4, scoped, tag = 'scoped memory for tpu_custom_call.1']
    %13 = vsyncpa [#allocation3], 0
    %14 = vsyncpa [#allocation6], 0
    %15 = vsyncpa [#allocation9], 0
    %16 = vsyncpa [#allocation4], 0
    %17 = vsyncpa [#allocation12], 0
    %18 = vsyncpa [#allocation15], 0
    // Predicated region
    $region2: #{tpu_custom_call.1} parent=1 // pred_check
      _
    $region3: #{tpu_custom_call.1} parent=1 // pred_check_branch
      %20 = sbr.rel (0) target = $region5
    $region4: #{tpu_custom_call.1} parent=1 // pred_region
      %s22 = ssub.s32 256, 256
      %23 = vsyncadd [#allocation3], %s22
      %s25 = sshll.u32 [#allocation2], 4
      %s26 = int_to_ptr.vmem [resolvable:$true] %s25
      %28 = dma.hbm_to_vmem [thread:$0]  %s0, 256, %s26, [#allocation3]
    $region5: #{tpu_custom_call.1} parent=1 // pred_fallthru
      _
    // Predicated region
    $region6: #{tpu_custom_call.1} parent=1 // pred_check
      _
    $region7: #{tpu_custom_call.1} parent=1 // pred_check_branch
      %30 = sbr.rel (0) target = $region9
    $region8: #{tpu_custom_call.1} parent=1 // pred_region
      %s32 = ssub.s32 256, 256
      %33 = vsyncadd [#allocation6], %s32
      %s35 = sshll.u32 [#allocation5], 4
      %s36 = int_to_ptr.vmem [resolvable:$true] %s35
      %38 = dma.hbm_to_vmem [thread:$0]  %s1, 256, %s36, [#allocation6]
    $region9: #{tpu_custom_call.1} parent=1 // pred_fallthru
      _
    // Predicated region
    $region10: #{tpu_custom_call.1} parent=1 // pred_check
      _
    $region11: #{tpu_custom_call.1} parent=1 // pred_check_branch
      %40 = sbr.rel (0) target = $region13
    $region12: #{tpu_custom_call.1} parent=1 // pred_region
      %s42 = ssub.s32 256, 256
      %43 = vsyncadd [#allocation6], %s42
      %s45 = sshll.u32 [#allocation7], 4
      %s46 = int_to_ptr.vmem [resolvable:$true] %s45
      %48 = dma.hbm_to_vmem [thread:$0]  %s2, 256, %s46, [#allocation6]
    $region13: #{tpu_custom_call.1} parent=1 // pred_fallthru
      _
    // Predicated region
    $region14: #{tpu_custom_call.1} parent=1 // pred_check
      _
    $region15: #{tpu_custom_call.1} parent=1 // pred_check_branch
      %50 = sbr.rel (0) target = $region17
    $region16: #{tpu_custom_call.1} parent=1 // pred_region
      %s52 = ssub.s32 256, 256
      %53 = vsyncadd [#allocation9], %s52
      %s55 = sshll.u32 [#allocation8], 4
      %s56 = int_to_ptr.vmem [resolvable:$true] %s55
      %58 = dma.hbm_to_vmem [thread:$0]  %s3, 256, %s56, [#allocation9]
    $region17: #{tpu_custom_call.1} parent=1 // pred_fallthru
      _
    // Predicated region
    $region18: #{tpu_custom_call.1} parent=1 // pred_check
      _
    $region19: #{tpu_custom_call.1} parent=1 // pred_check_branch
      %60 = sbr.rel (0) target = $region21
    $region20: #{tpu_custom_call.1} parent=1 // pred_region
      %61 = dma.done [#allocation3], 256
    $region21: #{tpu_custom_call.1} parent=1 // pred_fallthru
      _
    // Predicated region
    $region22: #{tpu_custom_call.1} parent=1 // pred_check
      _
    $region23: #{tpu_custom_call.1} parent=1 // pred_check_branch
      %63 = sbr.rel (0) target = $region25
    $region24: #{tpu_custom_call.1} parent=1 // pred_region
      %64 = dma.done [#allocation6], 256
    $region25: #{tpu_custom_call.1} parent=1 // pred_fallthru
      _
    // Predicated region
    $region26: #{tpu_custom_call.1} parent=1 // pred_check
      _
    $region27: #{tpu_custom_call.1} parent=1 // pred_check_branch
      %66 = sbr.rel (0) target = $region29
    $region28: #{tpu_custom_call.1} parent=1 // pred_region
      %67 = dma.done [#allocation6], 256
    $region29: #{tpu_custom_call.1} parent=1 // pred_fallthru
      _
    // Predicated region
    $region30: #{tpu_custom_call.1} parent=1 // pred_check
      _
    $region31: #{tpu_custom_call.1} parent=1 // pred_check_branch
      %69 = sbr.rel (0) target = $region33
    $region32: #{tpu_custom_call.1} parent=1 // pred_region
      %70 = dma.done [#allocation9], 256
    $region33: #{tpu_custom_call.1} parent=1 // pred_fallthru
      _
    %v71 = vld [vmem:[#allocation2] sm:$0xff]
    %v72 = vld [vmem:[#allocation2 + $0x8] sm:$0xff]
    %v73 = vld [vmem:[#allocation5] sm:$0xff]
    %v74 = vld [vmem:[#allocation5 + $0x8] sm:$0xff]
    %v75 = vld [vmem:[#allocation7] sm:$0xff]
    %v76 = vld [vmem:[#allocation7 + $0x8] sm:$0xff]
    %v77 = vld [vmem:[#allocation8] sm:$0xff]
    %v78 = vld [vmem:[#allocation8 + $0x8] sm:$0xff]
    %v79 = vadd.f32 %v71, %v75
    %v80 = vadd.f32 %v72, %v76
    %81 = vst [vmem:[#allocation10] sm:$0xff] %v79
    %82 = vst [vmem:[#allocation10 + $0x8] sm:$0xff] %v80
    %v83 = vadd.f32 %v79, 0.0001
    %v84 = vadd.f32 %v80, 0.0001
    %v85 = vrcp.pop %v83
    %v86 = vrcp.pop %v84
    %v87 = vmul.f32 %v83, %v85
    %v88 = vmul.f32 %v84, %v86
    %v89 = vsub.f32 2.0, %v87
    %v90 = vsub.f32 2.0, %v88
    %v91 = vmul.f32 %v85, %v89
    %v92 = vmul.f32 %v86, %v90
    %v93 = vmul.f32 %v73, %v71
    %v94 = vmul.f32 %v74, %v72
    %v95 = vmul.f32 %v77, %v75
    %v96 = vmul.f32 %v78, %v76
    %v97 = vadd.f32 %v93, %v95
    %v98 = vadd.f32 %v94, %v96
    %v99 = vmul.f32 %v97, %v91
    %v100 = vmul.f32 %v98, %v92
    %101 = vst [vmem:[#allocation11] sm:$0xff] %v99
    %102 = vst [vmem:[#allocation11 + $0x8] sm:$0xff] %v100
    %v103 = vsub.f32 %v73, %v77
    %v104 = vsub.f32 %v74, %v78
    %v105 = vmul.f32 %v75, %v103
    %v106 = vmul.f32 %v76, %v104
    %v107 = vmul.f32 %v105, %v103
    %v108 = vmul.f32 %v106, %v104
    %v109 = vmul.f32 %v71, %v107
    %v110 = vmul.f32 %v72, %v108
    %v111 = vadd.f32 %v107, %v109
    %v112 = vadd.f32 %v108, %v110
    %113 = vst [vmem:[#allocation13] sm:$0xff] %v111
    %114 = vst [vmem:[#allocation13 + $0x8] sm:$0xff] %v112
    %v115 = vadd.f32 %v107, %v108
    %116 = vadd.xlane.f32.xlu0 %v115
    %v117 = vpop.xlane.xlu0 %116
    %v118 = vrot.slane %v117, 4
    %v119 = vadd.f32 %v117, %v118
    %v120 = vrot.slane %v119, 2
    %v121 = vadd.f32 %v119, %v120
    %v122 = vrot.slane %v121, 1
    %v123 = vadd.f32 %v121, %v122
    %s124 = vtos %v123
    %v125 = vstv %s124
    %126 = vst [vmem:[#allocation14] sm:$0xff] %v125
    // Predicated region
    $region34: #{tpu_custom_call.1} parent=1 // pred_check
      _
    $region35: #{tpu_custom_call.1} parent=1 // pred_check_branch
      %128 = sbr.rel (0) target = $region37
    $region36: #{tpu_custom_call.1} parent=1 // pred_region
      %s130 = ssub.s32 256, 256
      %131 = vsyncadd [#allocation4], %s130
      %s133 = sshll.u32 [#allocation10], 4
      %s134 = int_to_ptr.vmem [resolvable:$true] %s133
      %136 = dma.vmem_to_hbm [thread:$0]  %s134, 256, %s4, [#allocation4]
    $region37: #{tpu_custom_call.1} parent=1 // pred_fallthru
      _
    // Predicated region
    $region38: #{tpu_custom_call.1} parent=1 // pred_check
      _
    $region39: #{tpu_custom_call.1} parent=1 // pred_check_branch
      %138 = sbr.rel (0) target = $region41
    $region40: #{tpu_custom_call.1} parent=1 // pred_region
      %s140 = ssub.s32 256, 256
      %141 = vsyncadd [#allocation12], %s140
      %s143 = sshll.u32 [#allocation11], 4
      %s144 = int_to_ptr.vmem [resolvable:$true] %s143
      %146 = dma.vmem_to_hbm [thread:$0]  %s144, 256, %s5, [#allocation12]
    $region41: #{tpu_custom_call.1} parent=1 // pred_fallthru
      _
    // Predicated region
    $region42: #{tpu_custom_call.1} parent=1 // pred_check
      _
    $region43: #{tpu_custom_call.1} parent=1 // pred_check_branch
      %148 = sbr.rel (0) target = $region45
    $region44: #{tpu_custom_call.1} parent=1 // pred_region
      %s150 = ssub.s32 256, 256
      %151 = vsyncadd [#allocation12], %s150
      %s153 = sshll.u32 [#allocation13], 4
      %s154 = int_to_ptr.vmem [resolvable:$true] %s153
      %156 = dma.vmem_to_hbm [thread:$0]  %s154, 256, %s6, [#allocation12]
    $region45: #{tpu_custom_call.1} parent=1 // pred_fallthru
      _
    // Predicated region
    $region46: #{tpu_custom_call.1} parent=1 // pred_check
      _
    $region47: #{tpu_custom_call.1} parent=1 // pred_check_branch
      %158 = sbr.rel (0) target = $region49
    $region48: #{tpu_custom_call.1} parent=1 // pred_region
      %s160 = ssub.s32 128, 128
      %161 = vsyncadd [#allocation15], %s160
      %s163 = sshll.u32 [#allocation14], 4
      %s164 = int_to_ptr.vmem [resolvable:$true] %s163
      %166 = dma.vmem_to_hbm [thread:$0]  %s164, 128, %s7, [#allocation15]
    $region49: #{tpu_custom_call.1} parent=1 // pred_fallthru
      _
    // Predicated region
    $region50: #{tpu_custom_call.1} parent=1 // pred_check
      _
    $region51: #{tpu_custom_call.1} parent=1 // pred_check_branch
      %168 = sbr.rel (0) target = $region53
    $region52: #{tpu_custom_call.1} parent=1 // pred_region
      %169 = dma.done [#allocation4], 256
    $region53: #{tpu_custom_call.1} parent=1 // pred_fallthru
      _
    // Predicated region
    $region54: #{tpu_custom_call.1} parent=1 // pred_check
      _
    $region55: #{tpu_custom_call.1} parent=1 // pred_check_branch
      %171 = sbr.rel (0) target = $region57
    $region56: #{tpu_custom_call.1} parent=1 // pred_region
      %172 = dma.done [#allocation12], 256
    $region57: #{tpu_custom_call.1} parent=1 // pred_fallthru
      _
    // Predicated region
    $region58: #{tpu_custom_call.1} parent=1 // pred_check
      _
    $region59: #{tpu_custom_call.1} parent=1 // pred_check_branch
      %174 = sbr.rel (0) target = $region61
    $region60: #{tpu_custom_call.1} parent=1 // pred_region
      %175 = dma.done [#allocation12], 256
    $region61: #{tpu_custom_call.1} parent=1 // pred_fallthru
      _
    // Predicated region
    $region62: #{tpu_custom_call.1} parent=1 // pred_check
      _
    $region63: #{tpu_custom_call.1} parent=1 // pred_check_branch
      %177 = sbr.rel (0) target = $region65
    $region64: #{tpu_custom_call.1} parent=1 // pred_region
      %178 = dma.done [#allocation15], 128
    $region65: #{tpu_custom_call.1} parent=1 // pred_fallthru
      _
    %179 = vsyncpa [#allocation3], 1
    %180 = vsyncpa [#allocation6], 1
    %181 = vsyncpa [#allocation9], 1
    %182 = vsyncpa [#allocation4], 1
    %183 = vsyncpa [#allocation12], 1
    %184 = vsyncpa [#allocation15], 1

</llo_original>
